<compile_context>
chip_gen: v7x
topology: tpu7x:2x2x1
jax: 0.10.0
libtpu: 0.0.40
codegen_flags: <defaults>
</compile_context>

<pallas_src>
import functools

import jax
import jax.numpy as jnp
from jax import lax
from jax.experimental import pallas as pl
from jax.experimental.pallas import tpu as pltpu

EPS = 1e-8


def _round_up(x, m):
    return (x + m - 1) // m * m


def _vmem_budget_bytes():
    """Per-generation VMEM budget (75% of capacity, capped at 100 MiB)."""
    cap = None
    try:
        cap = getattr(pltpu.get_tpu_info(), "vmem_capacity_bytes", None)
    except Exception:
        cap = None
    if not cap:
        cap = 64 * 1024 * 1024  # conservative default (v7x per-TC)
    return min(int(cap) * 3 // 4, 100 * 1024 * 1024)


def _choose_tile(c, c_out, l_out, halo_pad, budget_bytes):
    """Largest lane tile whose double-buffered blocks fit a fraction of VMEM."""
    block_budget = budget_bytes // 3
    cap = _round_up(max(l_out, 128), 128)
    for lt in (2048, 1024, 512, 256, 128):
        if lt < halo_pad:
            continue
        if lt > cap and lt > 128:
            continue
        live = 2 * 4 * (c * (lt + halo_pad) + (c_out + 2) * lt)  # dbl-buffered blocks
        live += 2 * c_out * c + 64 * c                           # weights (rough)
        if live <= block_budget:
            return lt
    return max(128, halo_pad)


# ---------------------------------------------------------------------------
# Fused kernel: depthwise conv + PReLU + gLN partial sums + pointwise matmul
# ---------------------------------------------------------------------------
def _fused_dsconv_kernel(xl_ref, xc_ref, dw_ref, a_ref, pw_ref,
                         z_ref, ssum_ref, ssq_ref,
                         *, kernel_size, dilation, padding, halo_pad, lt,
                         l_in, l_out):
    # xl_ref : (1, C, halo_pad)  left-halo input block (unpadded x)
    # xc_ref : (1, C, lt)        current input block   (unpadded x)
    # dw_ref : (C, K)            depthwise weights (f32)
    # a_ref  : (C, 1)            PReLU slope(s) (f32)
    # pw_ref : (Cout, C)         pointwise weights pre-scaled by gamma (bf16)
    # z_ref  : (1, Cout, lt)     z = pw_s @ PReLU(depthwise(x))          (f32)
    # ssum_ref / ssq_ref : (1, 1, lt)  per-column gLN partial sums       (f32)
    t = pl.program_id(1)

    xl = xl_ref[0]                                      # (C, halo_pad)
    xc = xc_ref[0]                                      # (C, lt)
    xw = jnp.concatenate([xl, xc], axis=-1)             # (C, halo_pad + lt)

    # In-kernel zero padding: lane q of xw is original input column
    #   orig = t*lt - halo_pad + q ;   zero anything outside [0, l_in).
    # This also neutralizes clamped / ragged (partially OOB) DMA blocks.
    w = halo_pad + lt
    q = lax.broadcasted_iota(jnp.int32, (1, w), 1)
    orig = t * lt - halo_pad + q
    xw = jnp.where((orig >= 0) & (orig < l_in), xw, 0.0)

    dw = dw_ref[...]                                    # (C, K)
    # Depthwise conv (groups=C, bias-free, stride 1), statically unrolled taps.
    # Output column j, tap k reads original column j + k*dilation - padding,
    # i.e. xw lane (jj + off_k).  Misaligned lane slices lower to XLU rotates,
    # which are free filler under the HBM/DMA bottleneck.
    off = halo_pad - padding
    acc = dw[:, 0:1] * xw[:, off:off + lt]
    for k in range(1, kernel_size):
        o = off + k * dilation
        acc = acc + dw[:, k:k + 1] * xw[:, o:o + lt]

    # PReLU (shared or per-channel slope, broadcast over lanes)
    a = a_ref[...]                                      # (C, 1)
    y = jnp.where(acc >= 0, acc, a * acc)               # (C, lt) f32

    # Mask the ragged output tail: keeps the gLN statistics exact and makes the
    # padded tail of z exactly zero (safe to carry padded L through a stack).
    col = t * lt + lax.broadcasted_iota(jnp.int32, (1, lt), 1)
    y = jnp.where(col < l_out, y, 0.0)

    # Per-column gLN partial sums (finalized in the wrapper).
    ssum_ref[0] = jnp.sum(y, axis=0, keepdims=True)
    ssq_ref[0] = jnp.sum(y * y, axis=0, keepdims=True)

    # Fused pointwise 1x1 conv on the MXU (bf16 operands, f32 accumulation);
    # y never leaves VMEM.
    z_ref[0] = jnp.dot(pw_ref[...], y.astype(pw_ref.dtype),
                       preferred_element_type=jnp.float32).astype(z_ref.dtype)


# ---------------------------------------------------------------------------
# Wrapper
# ---------------------------------------------------------------------------
def depthwise_separable_conv(x, dw_w, prelu_a, gamma, beta, pw_w, *,
                             kernel_size, stride, padding, dilation,
                             lt=None, out_dtype=None):
    """x: [B, C, L] f32.  dw_w: [C, K].  pw_w: [Cout, C].  Returns [B, Cout, L_out]."""
    if stride != 1:
        # TODO(synk): stride > 1 needs a phase-reshaped input; TemporalConvNet
        # only uses stride=1.
        raise NotImplementedError("stride must be 1")

    b, c, l = x.shape
    c_out = pw_w.shape[0]
    halo = dilation * (kernel_size - 1)
    if padding < halo:
        # TODO(synk): padding < halo needs an extra right-halo block; the module
        # only uses causal padding == (kernel_size-1)*dilation.
        raise NotImplementedError("padding must be >= dilation*(kernel_size-1)")
    l_out = l + 2 * padding - halo                       # stride == 1

    # Halo block width: smallest power-of-two multiple of 128 covering `padding`
    # (so it always divides any power-of-two lane tile).
    halo_pad = 128 * int(pl.next_power_of_2(pl.cdiv(max(padding, 1), 128)))

    budget = _vmem_budget_bytes()
    if lt is None:
        lt = _choose_tile(c, c_out, l_out, halo_pad, budget)
    lt = max(lt, halo_pad)
    assert lt % 128 == 0 and lt % halo_pad == 0, (lt, halo_pad)
    n_tiles = pl.cdiv(l_out, lt)
    l_out_p = n_tiles * lt

    # Index-map clamps: never DMA a block that lies entirely past the input;
    # the in-kernel column mask zeroes whatever such a block would contribute.
    r = lt // halo_pad
    max_halo_blk = max((l - 1) // halo_pad, 0)
    max_cur_blk = max((l - 1) // lt, 0)

    def xl_map(i, t):
        return (i, 0, jnp.minimum(jnp.maximum(t * r - 1, 0), max_halo_blk))

    def xc_map(i, t):
        return (i, 0, jnp.minimum(t, max_cur_blk))

    # PReLU slope(s): supports nn.PReLU() (1 param) and per-channel (C params).
    prelu_col = jnp.broadcast_to(
        jnp.asarray(prelu_a, jnp.float32).reshape(-1)[:, None], (c, 1))

    # Fold gamma into the pointwise weights (gLN is affine, matmul is linear):
    #   out = pw @ (gamma*(y-mu)*inv_std + beta)
    #       = inv_std * (pw*gamma^T) @ y + (pw@beta - inv_std*mu*rowsum(pw*gamma^T))
    gam = gamma.reshape(-1).astype(jnp.float32)
    bet = beta.reshape(-1).astype(jnp.float32)
    pw_s = pw_w.astype(jnp.float32) * gam[None, :]       # (Cout, C)
    pw_bf = pw_s.astype(jnp.bfloat16)

    kern = functools.partial(
        _fused_dsconv_kernel, kernel_size=kernel_size, dilation=dilation,
        padding=padding, halo_pad=halo_pad, lt=lt, l_in=l, l_out=l_out)

    z, ssum_p, ssq_p = pl.pallas_call(
        kern,
        out_shape=(jax.ShapeDtypeStruct((b, c_out, l_out_p), jnp.float32),
                   jax.ShapeDtypeStruct((b, 1, l_out_p), jnp.float32),
                   jax.ShapeDtypeStruct((b, 1, l_out_p), jnp.float32)),
        grid=(b, n_tiles),
        in_specs=[
            pl.BlockSpec((1, c, halo_pad), xl_map),               # left halo
            pl.BlockSpec((1, c, lt), xc_map),                     # current tile
            pl.BlockSpec((c, kernel_size), lambda i, t: (0, 0)),  # depthwise w
            pl.BlockSpec((c, 1), lambda i, t: (0, 0)),            # PReLU slope(s)
            pl.BlockSpec((c_out, c), lambda i, t: (0, 0)),        # pw*gamma (bf16)
        ],
        out_specs=(
            pl.BlockSpec((1, c_out, lt), lambda i, t: (i, 0, t)),  # z
            pl.BlockSpec((1, 1, lt), lambda i, t: (i, 0, t)),      # sum_c y
            pl.BlockSpec((1, 1, lt), lambda i, t: (i, 0, t)),      # sum_c y^2
        ),
        compiler_params=pltpu.CompilerParams(
            dimension_semantics=("parallel", "parallel"),
            vmem_limit_bytes=budget),
    )(x, x, dw_w.astype(jnp.float32), prelu_col, pw_bf)

    # --- finalize gLN stats (tiny per-sample reduction) -----------------------
    n = float(c) * float(l_out)
    ssum = jnp.sum(ssum_p[:, 0, :], axis=-1)
    ssq = jnp.sum(ssq_p[:, 0, :], axis=-1)
    mu = ssum / n
    # TODO(synk): one-pass E[y^2]-mu^2 can cancel if |mu| >> std; the clamp
    # guards it (PReLU outputs are near zero-mean in practice).
    var = jnp.maximum(ssq / n - mu * mu, 0.0)
    inv_std = lax.rsqrt(var + EPS)                                 # (B,)

    rowsum = jnp.sum(pw_s, axis=1)                                 # (Cout,)
    pw_beta = pw_w.astype(jnp.float32) @ bet                       # (Cout,)
    shift = (pw_beta[None, :, None]
             - (inv_std * mu)[:, None, None] * rowsum[None, :, None])  # (B,Cout,1)

    # Trivial fused-XLA epilogue (per review: no second pallas_call needed).
    out_dtype = x.dtype if out_dtype is None else out_dtype
    out = (inv_std[:, None, None] * z + shift).astype(out_dtype)
    # TODO(synk): in a full TCN stack, carry the padded length (and bf16) to the
    # next block and slice only once at the end.
    return out[:, :, :l_out] if l_out_p != l_out else out


# ---------------------------------------------------------------------------
# Pure-JAX reference mirroring the PyTorch module (f32 throughout)
# ---------------------------------------------------------------------------
def _reference(x, dw_w, prelu_a, gamma, beta, pw_w,
               *, kernel_size, stride, padding, dilation):
    c = x.shape[1]
    y = lax.conv_general_dilated(
        x, dw_w[:, None, :],
        window_strides=(stride,), padding=[(padding, padding)],
        rhs_dilation=(dilation,),
        dimension_numbers=("NCH", "OIH", "NCH"),
        feature_group_count=c)
    a = jnp.asarray(prelu_a, jnp.float32).reshape(-1)
    a = a.reshape(1, 1, 1) if a.size == 1 else a.reshape(1, c, 1)
    y = jnp.where(y >= 0, y, a * y)
    mu = jnp.mean(y, axis=(1, 2), keepdims=True)
    var = jnp.mean((y - mu) ** 2, axis=(1, 2), keepdims=True)
    y = gamma[None] * (y - mu) / jnp.sqrt(var + EPS) + beta[None]
    return jnp.einsum("oc,bcl->bol", pw_w, y)


if __name__ == "__main__":
    # Small shapes consistent with the module (causal padding as used inside
    # TemporalBlock).  L is deliberately NOT a multiple of 128 to exercise the
    # in-kernel padding / ragged-tail masking.
    B, C_IN, C_OUT = 2, 16, 32
    KS, STRIDE, DILATION = 3, 1, 2
    PADDING = (KS - 1) * DILATION          # causal_padding = 4
    L = 300                                 # L_out = 304

    key = jax.random.PRNGKey(0)
    k_x, k_dw, k_pw, k_g, k_b, k_a = jax.random.split(key, 6)

    x = jax.random.normal(k_x, (B, C_IN, L), dtype=jnp.float32)
    dw_w = 0.3 * jax.random.normal(k_dw, (C_IN, KS), dtype=jnp.float32)     # [C,1,K] squeezed
    pw_w = 0.3 * jax.random.normal(k_pw, (C_OUT, C_IN), dtype=jnp.float32)  # [Cout,Cin,1] squeezed
    gamma = (1.0 + 0.1 * jax.random.normal(k_g, (C_IN, 1))).astype(jnp.float32)
    beta = (0.1 * jax.random.normal(k_b, (C_IN, 1))).astype(jnp.float32)

    configs = [
        (jnp.full((1,), 0.25, dtype=jnp.float32), None),   # nn.PReLU() default, auto tile
        (0.25 + 0.1 * jax.random.normal(k_a, (C_IN,), dtype=jnp.float32), 128),  # per-channel
    ]
    for prelu_a, lt in configs:
        out = depthwise_separable_conv(
            x, dw_w, prelu_a, gamma, beta, pw_w,
            kernel_size=KS, stride=STRIDE, padding=PADDING, dilation=DILATION, lt=lt)
        out = jax.block_until_ready(out)

        ref = _reference(
            x, dw_w, prelu_a, gamma, beta, pw_w,
            kernel_size=KS, stride=STRIDE, padding=PADDING, dilation=DILATION)

        assert out.shape == ref.shape, (out.shape, ref.shape)
        # bf16 MXU operands (f32 accumulation) -> tolerance slightly looser than f32
        assert jnp.allclose(out, ref, atol=3e-2, rtol=3e-2), "mismatch vs reference"

    print("KERNEL_OK")
</pallas_src>

<mosaic_0001>
module attributes {stable_mosaic.version = 11 : i64} {
  func.func @_fused_dsconv_kernel(%arg0: i32, %arg1: i32, %arg2: memref<1x16x128xf32, #tpu.memory_space<vmem>>, %arg3: memref<1x16x256xf32, #tpu.memory_space<vmem>>, %arg4: memref<16x3xf32, #tpu.memory_space<vmem>>, %arg5: memref<16x1xf32, #tpu.memory_space<vmem>>, %arg6: memref<32x16xbf16, #tpu.memory_space<vmem>>, %arg7: memref<1x32x256xf32, #tpu.memory_space<vmem>>, %arg8: memref<1x1x256xf32, #tpu.memory_space<vmem>>, %arg9: memref<1x1x256xf32, #tpu.memory_space<vmem>>) attributes {dimension_semantics = [#tpu.dimension_semantics<parallel>, #tpu.dimension_semantics<parallel>], iteration_bounds = array<i64: 2, 2>, scalar_prefetch = 0 : i64, scratch_operands = 0 : i64, tpu.core_type = #tpu.core_type<tc>, window_params = [{transform_indices = @transform_0, window_bounds = array<i64: 1, 16, 128>}, {transform_indices = @transform_1, window_bounds = array<i64: 1, 16, 256>}, {pipeline_mode = #tpu.pipeline_mode<synchronous>, transform_indices = @transform_2, window_bounds = array<i64: 16, 3>}, {pipeline_mode = #tpu.pipeline_mode<synchronous>, transform_indices = @transform_3, window_bounds = array<i64: 16, 1>}, {pipeline_mode = #tpu.pipeline_mode<synchronous>, transform_indices = @transform_4, window_bounds = array<i64: 32, 16>}, {transform_indices = @transform_5, window_bounds = array<i64: 1, 32, 256>}, {transform_indices = @transform_6, window_bounds = array<i64: 1, 1, 256>}, {transform_indices = @transform_7, window_bounds = array<i64: 1, 1, 256>}]} {
    %c0 = arith.constant 0 : index
    %c0_0 = arith.constant 0 : index
    %c0_1 = arith.constant 0 : index
    %0 = vector.load %arg2[%c0, %c0_0, %c0_1] : memref<1x16x128xf32, #tpu.memory_space<vmem>>, vector<1x16x128xf32>
    %1 = vector.shape_cast %0 : vector<1x16x128xf32> to vector<16x128xf32>
    %c0_2 = arith.constant 0 : index
    %c0_3 = arith.constant 0 : index
    %c0_4 = arith.constant 0 : index
    %2 = vector.load %arg3[%c0_2, %c0_3, %c0_4] : memref<1x16x256xf32, #tpu.memory_space<vmem>>, vector<1x16x256xf32>
    %3 = vector.shape_cast %2 : vector<1x16x256xf32> to vector<16x256xf32>
    %4 = tpu.concatenate %1, %3 in 1 : vector<16x128xf32>, vector<16x256xf32> -> vector<16x384xf32>
    %5 = tpu.iota {dimensions = array<i32: 1>} : vector<1x384xi32>
    %c256_i32 = arith.constant 256 : i32
    %6 = arith.muli %arg1, %c256_i32 : i32
    %c128_i32 = arith.constant 128 : i32
    %7 = arith.subi %6, %c128_i32 : i32
    %8 = vector.broadcast %7 : i32 to vector<1x384xi32>
    %9 = arith.addi %8, %5 : vector<1x384xi32>
    %c0_i32 = arith.constant 0 : i32
    %10 = vector.broadcast %c0_i32 : i32 to vector<1x384xi32>
    %11 = arith.cmpi sge, %9, %10 : vector<1x384xi32>
    %c300_i32 = arith.constant 300 : i32
    %12 = vector.broadcast %c300_i32 : i32 to vector<1x384xi32>
    %13 = arith.cmpi slt, %9, %12 : vector<1x384xi32>
    %14 = arith.andi %11, %13 : vector<1x384xi1>
    %cst = arith.constant 0.000000e+00 : f32
    %15 = vector.shape_cast %14 : vector<1x384xi1> to vector<1x384xi1>
    %16 = vector.broadcast %15 : vector<1x384xi1> to vector<16x384xi1>
    %17 = vector.broadcast %cst : f32 to vector<16x384xf32>
    %18 = arith.select %16, %4, %17 : vector<16x384xi1>, vector<16x384xf32>
    %c0_5 = arith.constant 0 : index
    %c0_6 = arith.constant 0 : index
    %19 = vector.load %arg4[%c0_5, %c0_6] : memref<16x3xf32, #tpu.memory_space<vmem>>, vector<16x3xf32>
    %20 = vector.extract_strided_slice %19 {offsets = [0, 0], sizes = [16, 1], strides = [1, 1]} : vector<16x3xf32> to vector<16x1xf32>
    %21 = vector.extract_strided_slice %18 {offsets = [0, 124], sizes = [16, 256], strides = [1, 1]} : vector<16x384xf32> to vector<16x256xf32>
    %22 = vector.broadcast %20 : vector<16x1xf32> to vector<16x256xf32>
    %23 = arith.mulf %22, %21 : vector<16x256xf32>
    %24 = vector.extract_strided_slice %19 {offsets = [0, 1], sizes = [16, 1], strides = [1, 1]} : vector<16x3xf32> to vector<16x1xf32>
    %25 = vector.extract_strided_slice %18 {offsets = [0, 126], sizes = [16, 256], strides = [1, 1]} : vector<16x384xf32> to vector<16x256xf32>
    %26 = vector.broadcast %24 : vector<16x1xf32> to vector<16x256xf32>
    %27 = arith.mulf %26, %25 : vector<16x256xf32>
    %28 = arith.addf %23, %27 : vector<16x256xf32>
    %29 = vector.extract_strided_slice %19 {offsets = [0, 2], sizes = [16, 1], strides = [1, 1]} : vector<16x3xf32> to vector<16x1xf32>
    %30 = vector.extract_strided_slice %18 {offsets = [0, 128], sizes = [16, 256], strides = [1, 1]} : vector<16x384xf32> to vector<16x256xf32>
    %31 = vector.broadcast %29 : vector<16x1xf32> to vector<16x256xf32>
    %32 = arith.mulf %31, %30 : vector<16x256xf32>
    %33 = arith.addf %28, %32 : vector<16x256xf32>
    %c0_7 = arith.constant 0 : index
    %c0_8 = arith.constant 0 : index
    %34 = vector.load %arg5[%c0_7, %c0_8] : memref<16x1xf32, #tpu.memory_space<vmem>>, vector<16x1xf32>
    %cst_9 = arith.constant 0.000000e+00 : f32
    %35 = vector.broadcast %cst_9 : f32 to vector<16x256xf32>
    %36 = arith.cmpf oge, %33, %35 : vector<16x256xf32>
    %37 = vector.broadcast %34 : vector<16x1xf32> to vector<16x256xf32>
    %38 = arith.mulf %37, %33 : vector<16x256xf32>
    %39 = arith.select %36, %33, %38 : vector<16x256xi1>, vector<16x256xf32>
    %c256_i32_10 = arith.constant 256 : i32
    %40 = arith.muli %arg1, %c256_i32_10 : i32
    %41 = tpu.iota {dimensions = array<i32: 1>} : vector<1x256xi32>
    %42 = vector.broadcast %40 : i32 to vector<1x256xi32>
    %43 = arith.addi %42, %41 : vector<1x256xi32>
    %c304_i32 = arith.constant 304 : i32
    %44 = vector.broadcast %c304_i32 : i32 to vector<1x256xi32>
    %45 = arith.cmpi slt, %43, %44 : vector<1x256xi32>
    %cst_11 = arith.constant 0.000000e+00 : f32
    %46 = vector.shape_cast %45 : vector<1x256xi1> to vector<1x256xi1>
    %47 = vector.broadcast %46 : vector<1x256xi1> to vector<16x256xi1>
    %48 = vector.broadcast %cst_11 : f32 to vector<16x256xf32>
    %49 = arith.select %47, %39, %48 : vector<16x256xi1>, vector<16x256xf32>
    %cst_12 = arith.constant dense<0.000000e+00> : vector<256xf32>
    %50 = vector.multi_reduction <add>, %49, %cst_12 [0] : vector<16x256xf32> to vector<256xf32>
    %51 = vector.shape_cast %50 : vector<256xf32> to vector<1x256xf32>
    %c0_13 = arith.constant 0 : index
    %c0_14 = arith.constant 0 : index
    %c0_15 = arith.constant 0 : index
    %52 = vector.load %arg8[%c0_13, %c0_14, %c0_15] : memref<1x1x256xf32, #tpu.memory_space<vmem>>, vector<1x1x256xf32>
    %53 = vector.shape_cast %52 : vector<1x1x256xf32> to vector<1x256xf32>
    %54 = vector.shape_cast %51 : vector<1x256xf32> to vector<1x1x256xf32>
    tpu.vector_store %arg8[%c0_13, %c0_14, %c0_15], %54 {strides = array<i32>} : memref<1x1x256xf32, #tpu.memory_space<vmem>>, vector<1x1x256xf32>,
    %55 = arith.mulf %49, %49 : vector<16x256xf32>
    %cst_16 = arith.constant dense<0.000000e+00> : vector<256xf32>
    %56 = vector.multi_reduction <add>, %55, %cst_16 [0] : vector<16x256xf32> to vector<256xf32>
    %57 = vector.shape_cast %56 : vector<256xf32> to vector<1x256xf32>
    %c0_17 = arith.constant 0 : index
    %c0_18 = arith.constant 0 : index
    %c0_19 = arith.constant 0 : index
    %58 = vector.load %arg9[%c0_17, %c0_18, %c0_19] : memref<1x1x256xf32, #tpu.memory_space<vmem>>, vector<1x1x256xf32>
    %59 = vector.shape_cast %58 : vector<1x1x256xf32> to vector<1x256xf32>
    %60 = vector.shape_cast %57 : vector<1x256xf32> to vector<1x1x256xf32>
    tpu.vector_store %arg9[%c0_17, %c0_18, %c0_19], %60 {strides = array<i32>} : memref<1x1x256xf32, #tpu.memory_space<vmem>>, vector<1x1x256xf32>,
    %c0_20 = arith.constant 0 : index
    %c0_21 = arith.constant 0 : index
    %61 = vector.load %arg6[%c0_20, %c0_21] : memref<32x16xbf16, #tpu.memory_space<vmem>>, vector<32x16xbf16>
    %62 = arith.truncf %49 : vector<16x256xf32> to vector<16x256xbf16>
    %cst_22 = arith.constant dense<0.000000e+00> : vector<32x256xf32>
    %63 = tpu.matmul %61, %62, %cst_22 {dimension_numbers = #tpu.dot_dimension_numbers<[1], [0], [0], [1], [0, 0, 1, 1], [], []>} : vector<32x16xbf16>, vector<16x256xbf16>, vector<32x256xf32> -> vector<32x256xf32>
    %c0_23 = arith.constant 0 : index
    %c0_24 = arith.constant 0 : index
    %c0_25 = arith.constant 0 : index
    %64 = vector.load %arg7[%c0_23, %c0_24, %c0_25] : memref<1x32x256xf32, #tpu.memory_space<vmem>>, vector<1x32x256xf32>
    %65 = vector.shape_cast %64 : vector<1x32x256xf32> to vector<32x256xf32>
    %66 = vector.shape_cast %63 : vector<32x256xf32> to vector<1x32x256xf32>
    tpu.vector_store %arg7[%c0_23, %c0_24, %c0_25], %66 {strides = array<i32>} : memref<1x32x256xf32, #tpu.memory_space<vmem>>, vector<1x32x256xf32>,
    return
  }
  func.func @transform_0(%arg0: i32, %arg1: i32) -> (i32, i32, i32) {
    %c2_i32 = arith.constant 2 : i32
    %0 = arith.muli %arg1, %c2_i32 : i32
    %c1_i32 = arith.constant 1 : i32
    %1 = arith.subi %0, %c1_i32 : i32
    %c0_i32 = arith.constant 0 : i32
    %2 = arith.maxsi %1, %c0_i32 : i32
    %c2_i32_0 = arith.constant 2 : i32
    %3 = arith.minsi %2, %c2_i32_0 : i32
    %c0_i32_1 = arith.constant 0 : i32
    %c0_i32_2 = arith.constant 0 : i32
    return %arg0, %c0_i32_1, %3 : i32, i32, i32
  }
  func.func @transform_1(%arg0: i32, %arg1: i32) -> (i32, i32, i32) {
    %c1_i32 = arith.constant 1 : i32
    %0 = arith.minsi %arg1, %c1_i32 : i32
    %c0_i32 = arith.constant 0 : i32
    %c0_i32_0 = arith.constant 0 : i32
    return %arg0, %c0_i32, %0 : i32, i32, i32
  }
  func.func @transform_2(%arg0: i32, %arg1: i32) -> (i32, i32) {
    %c0_i32 = arith.constant 0 : i32
    %c0_i32_0 = arith.constant 0 : i32
    %c0_i32_1 = arith.constant 0 : i32
    return %c0_i32, %c0_i32_0 : i32, i32
  }
  func.func @transform_3(%arg0: i32, %arg1: i32) -> (i32, i32) {
    %c0_i32 = arith.constant 0 : i32
    %c0_i32_0 = arith.constant 0 : i32
    %c0_i32_1 = arith.constant 0 : i32
    return %c0_i32, %c0_i32_0 : i32, i32
  }
  func.func @transform_4(%arg0: i32, %arg1: i32) -> (i32, i32) {
    %c0_i32 = arith.constant 0 : i32
    %c0_i32_0 = arith.constant 0 : i32
    %c0_i32_1 = arith.constant 0 : i32
    return %c0_i32, %c0_i32_0 : i32, i32
  }
  func.func @transform_5(%arg0: i32, %arg1: i32) -> (i32, i32, i32) {
    %c0_i32 = arith.constant 0 : i32
    %c0_i32_0 = arith.constant 0 : i32
    return %arg0, %c0_i32, %arg1 : i32, i32, i32
  }
  func.func @transform_6(%arg0: i32, %arg1: i32) -> (i32, i32, i32) {
    %c0_i32 = arith.constant 0 : i32
    %c0_i32_0 = arith.constant 0 : i32
    return %arg0, %c0_i32, %arg1 : i32, i32, i32
  }
  func.func @transform_7(%arg0: i32, %arg1: i32) -> (i32, i32, i32) {
    %c0_i32 = arith.constant 0 : i32
    %c0_i32_0 = arith.constant 0 : i32
    return %arg0, %c0_i32, %arg1 : i32, i32, i32
  }
}

</mosaic_0001>

<llo_original>
// kernel: tpu_custom_call.1
$region0: #{tpu_custom_call.1}
  #allocation0 [shape = 'u32[]', space=smem, size = 0x4, offset = 0x4, fixed_abs, tag = 'smem constant byte address 0x4 - core index']
  #allocation1 [shape = 'u32[144,128]{1,0:T(1,128)}', space=vmem, size = 0x12000, scoped, tag = 'internal scratch']
  %s0 = inlined_call_operand.hbm [shape: f32[2,16,300], index: 0, kind: input, shape index: {}]
  %s1 = inlined_call_operand.hbm [shape: f32[2,16,300], index: 1, kind: input, shape index: {}]
  %s2 = inlined_call_operand.vmem [shape: f32[16,3], index: 2, kind: input, shape index: {}]
  %s3 = inlined_call_operand.vmem [shape: f32[16,1], index: 3, kind: input, shape index: {}]
  %s4 = inlined_call_operand.vmem [shape: bf16[32,16], index: 4, kind: input, shape index: {}]
  %s5 = inlined_call_operand.hbm [shape: f32[2,32,512], index: 5, kind: output, shape index: {0}]
  %s6 = inlined_call_operand.hbm [shape: f32[2,1,512], index: 6, kind: output, shape index: {1}]
  %s7 = inlined_call_operand.hbm [shape: f32[2,1,512], index: 7, kind: output, shape index: {2}]
  %8 = xla_tuple %s5, %s6, %s7
  %s9 = sld [smem:[#allocation0]]
  $region77: #{tpu_custom_call.1} parent=0
    _
  %s11 = ssub.s32 1, %s9
  %s12 = scalar_select 0, %s11, %s9
  $region1: #{tpu_custom_call.1} parent=0
    #allocation2 [shape = 'u8[16384]{0}', space=vmem, size = 0x4000, scoped, tag = 'input window, operand 0']
    #allocation3 [shape = 's32[2]{0}', space=sflag, size = 0x8, scoped, tag = 'scoped memory for tpu_custom_call.1']
    #allocation4 [shape = 's32[2]{0}', space=sflag, size = 0x8, scoped, tag = 'scoped memory for tpu_custom_call.1']
    #allocation5 [shape = 'u8[32768]{0}', space=vmem, size = 0x8000, scoped, tag = 'input window, operand 1']
    #allocation6 [shape = 's32[2]{0}', space=sflag, size = 0x8, scoped, tag = 'scoped memory for tpu_custom_call.1']
    #allocation7 [shape = 'u8[65536]{0}', space=vmem, size = 0x10000, scoped, tag = 'output window, operand 0']
    #allocation8 [shape = 'u8[2048]{0}', space=vmem, size = 0x800, scoped, tag = 'output window, operand 1']
    #allocation9 [shape = 's32[2]{0}', space=sflag, size = 0x8, scoped, tag = 'scoped memory for tpu_custom_call.1']
    #allocation10 [shape = 'u8[2048]{0}', space=vmem, size = 0x800, scoped, tag = 'output window, operand 2']
    %13 = vsyncpa [#allocation3], 0
    %s14 = scalar_lea.sflag [#allocation3], 1
    %15 = vsyncpa %s14, 0
    %16 = vsyncpa [#allocation6], 0
    %s17 = scalar_lea.sflag [#allocation6], 1
    %18 = vsyncpa %s17, 0
    %19 = vsyncpa [#allocation4], 0
    %s20 = scalar_lea.sflag [#allocation4], 1
    %21 = vsyncpa %s20, 0
    %22 = vsyncpa [#allocation9], 0
    %s23 = scalar_lea.sflag [#allocation9], 1
    %24 = vsyncpa %s23, 0
    loop: start=0, step=1, limit=6
    $region2: #{tpu_custom_call.1} parent=1 // loop_pre_header
      _
    $region3: #{tpu_custom_call.1} parent=1 // loop_header
      %s26 = sphi 0, %s30
      %p27 = scmp.ge.s32.totalorder %s26, 6
      %s33 = sphi 0, %s45
      %s34 = sphi 0, %s41
      %s35 = sphi 0, %s33
      %s36 = sphi 0, %s34
      %s37 = sphi 0, %s35
      %s38 = sphi 0, %s36
      %s62 = sphi 0, %s64
      %s65 = sphi 0, %s62
      %s66 = sphi 0, %s65
      %s82 = sphi 0, %s66
      %s94 = sphi 0, %s96
      %s97 = sphi 0, %s94
      %s98 = sphi 0, %s97
      %s114 = sphi 0, %s98
      %s118 = sphi 0, %s118
      %s120 = sphi 0, %s118
      %s121 = sphi 0, %s120
      %s135 = sphi 0, %s121
      %s139 = sphi 0, %s139
      %s141 = sphi 0, %s139
      %s142 = sphi 0, %s141
      %s156 = sphi 0, %s142
      %s160 = sphi 0, %s160
      %s162 = sphi 0, %s160
      %s163 = sphi 0, %s162
      %s177 = sphi 0, %s163
      %s185 = sphi 0, %s187
      %s188 = sphi 0, %s185
      %s189 = sphi 0, %s188
      %s205 = sphi 0, %s189
      %s213 = sphi 0, %s215
      %s216 = sphi 0, %s213
      %s217 = sphi 0, %s216
      %s233 = sphi 0, %s217
      %s241 = sphi 0, %s243
      %s244 = sphi 0, %s241
      %s245 = sphi 0, %s244
      %s261 = sphi 0, %s245
    $region4: #{tpu_custom_call.1} parent=1 // loop_header_branch
      %29 = sbr.rel (%p27) target = $region8
    $region5: #{tpu_custom_call.1} parent=1 // loop_body
      %s31 = ssub.s32 %s26, 1
      %s32 = ssub.s32 %s26, 2
      %s39 = sadd.s32 1, %s34
      %p40 = scmp.ge.s32.totalorder %s39, 2
      %s41 = scalar_select %p40, 0, %s39
      %s42 = sadd.s32 1, %s33
      %s43 = scalar_select %p40, %s42, %s33
      %p44 = scmp.ge.s32.totalorder %s43, 2
      %s45 = scalar_select %p44, 0, %s43
      %s46 = smul.u32 %s34, 2
      %s47 = ssub.s32 %s46, 1
      %p48 = scmp.gt.s32.totalorder %s47, 0
      %s49 = scalar_select %p48, %s47, 0
      %p50 = scmp.lt.s32.totalorder %s49, 2
      %s51 = scalar_select %p50, %s49, 2
      %s52 = smul.u32 %s41, 2
      %s53 = ssub.s32 %s52, 1
      %p54 = scmp.gt.s32.totalorder %s53, 0
      %s55 = scalar_select %p54, %s53, 0
      %p56 = scmp.lt.s32.totalorder %s55, 2
      %s57 = scalar_select %p56, %s55, 2
      %s58 = ssub.s32 %s33, %s45
      %s59 = ssub.s32 %s51, %s57
      %s60 = sor.u32 %s58, %s59
      %p61 = scmp.eq.s32.totalorder %s60, 0
      %s63 = sadd.s32 %s62, 1
      %s64 = scalar_select %p61, %s62, %s63
      %p67 = pneg %p61
      %p68 = scmp.eq.s32.totalorder %s26, 3
      %p69 = por %p67, %p68
      %p70 = scmp.ne.s32.totalorder %s62, %s65
      %p71 = scmp.eq.s32.totalorder %s26, 0
      %p72 = por %p70, %p71
      %p73 = scmp.ne.s32.totalorder %s62, %s65
      %p74 = scmp.eq.s32.totalorder %s31, 3
      %p75 = por %p73, %p74
      %p76 = scmp.ne.s32.totalorder %s65, %s66
      %p77 = scmp.eq.s32.totalorder %s31, 0
      %p78 = por %p76, %p77
      %p79 = scmp.ne.s32.totalorder %s65, %s66
      %p80 = scmp.eq.s32.totalorder %s32, 3
      %p81 = por %p79, %p80
      %p83 = scmp.ne.s32.totalorder %s66, %s82
      %p84 = scmp.eq.s32.totalorder %s32, 0
      %p85 = por %p83, %p84
      %p86 = scmp.lt.s32.totalorder %s34, 1
      %s87 = scalar_select %p86, %s34, 1
      %p88 = scmp.lt.s32.totalorder %s41, 1
      %s89 = scalar_select %p88, %s41, 1
      %s90 = ssub.s32 %s33, %s45
      %s91 = ssub.s32 %s87, %s89
      %s92 = sor.u32 %s90, %s91
      %p93 = scmp.eq.s32.totalorder %s92, 0
      %s95 = sadd.s32 %s94, 1
      %s96 = scalar_select %p93, %s94, %s95
      %p99 = pneg %p93
      %p100 = scmp.eq.s32.totalorder %s26, 3
      %p101 = por %p99, %p100
      %p102 = scmp.ne.s32.totalorder %s94, %s97
      %p103 = scmp.eq.s32.totalorder %s26, 0
      %p104 = por %p102, %p103
      %p105 = scmp.ne.s32.totalorder %s94, %s97
      %p106 = scmp.eq.s32.totalorder %s31, 3
      %p107 = por %p105, %p106
      %p108 = scmp.ne.s32.totalorder %s97, %s98
      %p109 = scmp.eq.s32.totalorder %s31, 0
      %p110 = por %p108, %p109
      %p111 = scmp.ne.s32.totalorder %s97, %s98
      %p112 = scmp.eq.s32.totalorder %s32, 3
      %p113 = por %p111, %p112
      %p115 = scmp.ne.s32.totalorder %s98, %s114
      %p116 = scmp.eq.s32.totalorder %s32, 0
      %p117 = por %p115, %p116
      %s119 = sadd.s32 %s118, 1
      %p122 = scmp.eq.s32.totalorder %s26, 3
      %p123 = scmp.ne.s32.totalorder %s118, %s120
      %p124 = scmp.eq.s32.totalorder %s26, 0
      %p125 = por %p123, %p124
      %p126 = scmp.ne.s32.totalorder %s118, %s120
      %p127 = scmp.eq.s32.totalorder %s31, 3
      %p128 = por %p126, %p127
      %p129 = scmp.ne.s32.totalorder %s120, %s121
      %p130 = scmp.eq.s32.totalorder %s31, 0
      %p131 = por %p129, %p130
      %p132 = scmp.ne.s32.totalorder %s120, %s121
      %p133 = scmp.eq.s32.totalorder %s32, 3
      %p134 = por %p132, %p133
      %p136 = scmp.ne.s32.totalorder %s121, %s135
      %p137 = scmp.eq.s32.totalorder %s32, 0
      %p138 = por %p136, %p137
      %s140 = sadd.s32 %s139, 1
      %p143 = scmp.eq.s32.totalorder %s26, 3
      %p144 = scmp.ne.s32.totalorder %s139, %s141
      %p145 = scmp.eq.s32.totalorder %s26, 0
      %p146 = por %p144, %p145
      %p147 = scmp.ne.s32.totalorder %s139, %s141
      %p148 = scmp.eq.s32.totalorder %s31, 3
      %p149 = por %p147, %p148
      %p150 = scmp.ne.s32.totalorder %s141, %s142
      %p151 = scmp.eq.s32.totalorder %s31, 0
      %p152 = por %p150, %p151
      %p153 = scmp.ne.s32.totalorder %s141, %s142
      %p154 = scmp.eq.s32.totalorder %s32, 3
      %p155 = por %p153, %p154
      %p157 = scmp.ne.s32.totalorder %s142, %s156
      %p158 = scmp.eq.s32.totalorder %s32, 0
      %p159 = por %p157, %p158
      %s161 = sadd.s32 %s160, 1
      %p164 = scmp.eq.s32.totalorder %s26, 3
      %p165 = scmp.ne.s32.totalorder %s160, %s162
      %p166 = scmp.eq.s32.totalorder %s26, 0
      %p167 = por %p165, %p166
      %p168 = scmp.ne.s32.totalorder %s160, %s162
      %p169 = scmp.eq.s32.totalorder %s31, 3
      %p170 = por %p168, %p169
      %p171 = scmp.ne.s32.totalorder %s162, %s163
      %p172 = scmp.eq.s32.totalorder %s31, 0
      %p173 = por %p171, %p172
      %p174 = scmp.ne.s32.totalorder %s162, %s163
      %p175 = scmp.eq.s32.totalorder %s32, 3
      %p176 = por %p174, %p175
      %p178 = scmp.ne.s32.totalorder %s163, %s177
      %p179 = scmp.eq.s32.totalorder %s32, 0
      %p180 = por %p178, %p179
      %s181 = ssub.s32 %s33, %s45
      %s182 = ssub.s32 %s34, %s41
      %s183 = sor.u32 %s181, %s182
      %p184 = scmp.eq.s32.totalorder %s183, 0
      %s186 = sadd.s32 %s185, 1
      %s187 = scalar_select %p184, %s185, %s186
      %p190 = pneg %p184
      %p191 = scmp.eq.s32.totalorder %s26, 3
      %p192 = por %p190, %p191
      %p193 = scmp.ne.s32.totalorder %s185, %s188
      %p194 = scmp.eq.s32.totalorder %s26, 0
      %p195 = por %p193, %p194
      %p196 = scmp.ne.s32.totalorder %s185, %s188
      %p197 = scmp.eq.s32.totalorder %s31, 3
      %p198 = por %p196, %p197
      %p199 = scmp.ne.s32.totalorder %s188, %s189
      %p200 = scmp.eq.s32.totalorder %s31, 0
      %p201 = por %p199, %p200
      %p202 = scmp.ne.s32.totalorder %s188, %s189
      %p203 = scmp.eq.s32.totalorder %s32, 3
      %p204 = por %p202, %p203
      %p206 = scmp.ne.s32.totalorder %s189, %s205
      %p207 = scmp.eq.s32.totalorder %s32, 0
      %p208 = por %p206, %p207
      %s209 = ssub.s32 %s33, %s45
      %s210 = ssub.s32 %s34, %s41
      %s211 = sor.u32 %s209, %s210
      %p212 = scmp.eq.s32.totalorder %s211, 0
      %s214 = sadd.s32 %s213, 1
      %s215 = scalar_select %p212, %s213, %s214
      %p218 = pneg %p212
      %p219 = scmp.eq.s32.totalorder %s26, 3
      %p220 = por %p218, %p219
      %p221 = scmp.ne.s32.totalorder %s213, %s216
      %p222 = scmp.eq.s32.totalorder %s26, 0
      %p223 = por %p221, %p222
      %p224 = scmp.ne.s32.totalorder %s213, %s216
      %p225 = scmp.eq.s32.totalorder %s31, 3
      %p226 = por %p224, %p225
      %p227 = scmp.ne.s32.totalorder %s216, %s217
      %p228 = scmp.eq.s32.totalorder %s31, 0
      %p229 = por %p227, %p228
      %p230 = scmp.ne.s32.totalorder %s216, %s217
      %p231 = scmp.eq.s32.totalorder %s32, 3
      %p232 = por %p230, %p231
      %p234 = scmp.ne.s32.totalorder %s217, %s233
      %p235 = scmp.eq.s32.totalorder %s32, 0
      %p236 = por %p234, %p235
      %s237 = ssub.s32 %s33, %s45
      %s238 = ssub.s32 %s34, %s41
      %s239 = sor.u32 %s237, %s238
      %p240 = scmp.eq.s32.totalorder %s239, 0
      %s242 = sadd.s32 %s241, 1
      %s243 = scalar_select %p240, %s241, %s242
      %p246 = pneg %p240
      %p247 = scmp.eq.s32.totalorder %s26, 3
      %p248 = por %p246, %p247
      %p249 = scmp.ne.s32.totalorder %s241, %s244
      %p250 = scmp.eq.s32.totalorder %s26, 0
      %p251 = por %p249, %p250
      %p252 = scmp.ne.s32.totalorder %s241, %s244
      %p253 = scmp.eq.s32.totalorder %s31, 3
      %p254 = por %p252, %p253
      %p255 = scmp.ne.s32.totalorder %s244, %s245
      %p256 = scmp.eq.s32.totalorder %s31, 0
      %p257 = por %p255, %p256
      %p258 = scmp.ne.s32.totalorder %s244, %s245
      %p259 = scmp.eq.s32.totalorder %s32, 3
      %p260 = por %p258, %p259
      %p262 = scmp.ne.s32.totalorder %s245, %s261
      %p263 = scmp.eq.s32.totalorder %s32, 0
      %p264 = por %p262, %p263
      %p265 = scmp.le.s32.totalorder 1, %s26
      %p266 = scmp.lt.s32.totalorder %s26, 5
      %p267 = pnand %p265, %p266
      %p268 = pneg %p267
      // Predicated region
      $region9: #{tpu_custom_call.1} parent=5 // pred_check
        _
      $region10: #{tpu_custom_call.1} parent=5 // pred_check_branch
        %270 = sbr.rel (%p267) target = $region12
      $region11: #{tpu_custom_call.1} parent=5 // pred_region
        %s271 = ssub.s32 %s26, 1
        // Predicated region
        $region13: #{tpu_custom_call.1} parent=11 // pred_check
          %p272 = pneg %p131
        $region14: #{tpu_custom_call.1} parent=11 // pred_check_branch
          %274 = sbr.rel (%p272) target = $region16
        $region15: #{tpu_custom_call.1} parent=11 // pred_region
          _
        $region16: #{tpu_custom_call.1} parent=11 // pred_fallthru
          _
        // Predicated region
        $region17: #{tpu_custom_call.1} parent=11 // pred_check
          %p275 = pneg %p152
        $region18: #{tpu_custom_call.1} parent=11 // pred_check_branch
          %277 = sbr.rel (%p275) target = $region20
        $region19: #{tpu_custom_call.1} parent=11 // pred_region
          _
        $region20: #{tpu_custom_call.1} parent=11 // pred_fallthru
          _
        // Predicated region
        $region21: #{tpu_custom_call.1} parent=11 // pred_check
          %p278 = pneg %p173
        $region22: #{tpu_custom_call.1} parent=11 // pred_check_branch
          %280 = sbr.rel (%p278) target = $region24
        $region23: #{tpu_custom_call.1} parent=11 // pred_region
          _
        $region24: #{tpu_custom_call.1} parent=11 // pred_fallthru
          _
      $region12: #{tpu_custom_call.1} parent=5 // pred_fallthru
        _
      %p281 = scmp.lt.s32.totalorder %s26, 4
      // Predicated region
      $region25: #{tpu_custom_call.1} parent=5 // pred_check
        %p282 = pneg %p281
      $region26: #{tpu_custom_call.1} parent=5 // pred_check_branch
        %284 = sbr.rel (%p282) target = $region28
      $region27: #{tpu_custom_call.1} parent=5 // pred_region
        // Predicated region
        $region29: #{tpu_custom_call.1} parent=27 // pred_check
          %p285 = pneg %p72
        $region30: #{tpu_custom_call.1} parent=27 // pred_check_branch
          %287 = sbr.rel (%p285) target = $region32
        $region31: #{tpu_custom_call.1} parent=27 // pred_region
          %s288 = sand.u32 %s62, 1
          %s289 = scalar_lea.sflag [#allocation3], %s288
          %s290 = sand.u32 %s62, 1
          %s291 = smul.addr %s290, 16
          %s292 = scalar_lea.vmem [#allocation2], %s291
          %s293 = smul.u32 %s34, 2
          %s294 = ssub.s32 %s293, 1
          %p295 = scmp.gt.s32.totalorder %s294, 0
          %s296 = scalar_select %p295, %s294, 0
          %p297 = scmp.lt.s32.totalorder %s296, 2
          %s298 = scalar_select %p297, %s296, 2
          %s300 = ssub.s32 256, 256
          %301 = vsyncadd %s289, %s300
          %s302 = smul.addr %s33, 6
          %s303 = sadd.s32 %s298, %s302
          %s304 = smul.addr %s303, 128
          %s305 = scalar_lea.hbm %s0, %s304
          %s306 = sshll.u32 %s292, 4
          %s307 = int_to_ptr.vmem [resolvable:$true] %s306
          %312 = dma.hbm_to_vmem [thread:$0]  %s305, 256, %s307, %s289, 384, 128, 8
        $region32: #{tpu_custom_call.1} parent=27 // pred_fallthru
          _
        // Predicated region
        $region33: #{tpu_custom_call.1} parent=27 // pred_check
          %p313 = pneg %p104
        $region34: #{tpu_custom_call.1} parent=27 // pred_check_branch
          %315 = sbr.rel (%p313) target = $region36
        $region35: #{tpu_custom_call.1} parent=27 // pred_region
          %s316 = sand.u32 %s94, 1
          %s317 = scalar_lea.sflag [#allocation6], %s316
          %s318 = sand.u32 %s94, 1
          %s319 = smul.addr %s318, 32
          %s320 = scalar_lea.vmem [#allocation5], %s319
          %p321 = scmp.lt.s32.totalorder %s34, 1
          %s322 = scalar_select %p321, %s34, 1
          %s323 = smul.u32 2, %s322
          %s324 = ssub.s32 3, %s323
          %p325 = scmp.lt.s32.totalorder %s324, 2
          %s326 = scalar_select %p325, %s324, 2
          %s327 = smul.u32 256, %s326
          %s329 = ssub.s32 512, %s327
          %330 = vsyncadd %s317, %s329
          %p331 = scmp.ne.s32.totalorder 0, %s327
          %s332 = smul.addr %s33, 6
          %s333 = sadd.s32 %s323, %s332
          %s334 = smul.addr %s333, 128
          %s335 = scalar_lea.hbm %s1, %s334
          %s336 = smul.u32 %s326, 8
          %s337 = smul.u32 %s336, 2
          %s338 = sshll.u32 %s320, 4
          %s339 = int_to_ptr.vmem [resolvable:$true] %s338
          %s340 = sshll.u32 %s337, 4
          %344 = dma.hbm_to_vmem [thread:$0]  (%p331), %s335, %s340, %s339, %s317, 384, 256, %s336
        $region36: #{tpu_custom_call.1} parent=27 // pred_fallthru
          _
      $region28: #{tpu_custom_call.1} parent=5 // pred_fallthru
        _
      %p345 = scmp.le.s32.totalorder 1, %s26
      %p346 = scmp.lt.s32.totalorder %s26, 5
      %p347 = pnand %p345, %p346
      %p348 = pneg %p347
      // Predicated region
      $region37: #{tpu_custom_call.1} parent=5 // pred_check
        _
      $region38: #{tpu_custom_call.1} parent=5 // pred_check_branch
        %350 = sbr.rel (%p347) target = $region40
      $region39: #{tpu_custom_call.1} parent=5 // pred_region
        %s351 = ssub.s32 %s26, 1
        %s352 = sand.u32 %s65, 1
        %s353 = scalar_lea.sflag [#allocation3], %s352
        %s354 = sand.u32 %s65, 1
        %s355 = smul.addr %s354, 16
        %s356 = scalar_lea.vmem [#allocation2], %s355
        // Predicated region
        $region41: #{tpu_custom_call.1} parent=39 // pred_check
          %p357 = pneg %p78
        $region42: #{tpu_custom_call.1} parent=39 // pred_check_branch
          %359 = sbr.rel (%p357) target = $region44
        $region43: #{tpu_custom_call.1} parent=39 // pred_region
          %360 = dma.done %s353, 256
        $region44: #{tpu_custom_call.1} parent=39 // pred_fallthru
          _
        %s361 = sand.u32 %s97, 1
        %s362 = scalar_lea.sflag [#allocation6], %s361
        %s363 = sand.u32 %s97, 1
        %s364 = smul.addr %s363, 32
        %s365 = scalar_lea.vmem [#allocation5], %s364
        // Predicated region
        $region45: #{tpu_custom_call.1} parent=39 // pred_check
          %p366 = pneg %p110
        $region46: #{tpu_custom_call.1} parent=39 // pred_check_branch
          %368 = sbr.rel (%p366) target = $region48
        $region47: #{tpu_custom_call.1} parent=39 // pred_region
          %369 = dma.done %s362, 512
        $region48: #{tpu_custom_call.1} parent=39 // pred_fallthru
          _
        %s370 = sand.u32 %s65, 1
        %s371 = scalar_lea.sflag [#allocation3], %s370
        %s372 = sand.u32 %s65, 1
        %s373 = smul.addr %s372, 16
        %s374 = scalar_lea.vmem [#allocation2], %s373
        %p375 = pneg %p78
        %p376 = pneg %p75
        %s377 = sand.u32 %s97, 1
        %s378 = scalar_lea.sflag [#allocation6], %s377
        %s379 = sand.u32 %s97, 1
        %s380 = smul.addr %s379, 32
        %s381 = scalar_lea.vmem [#allocation5], %s380
        %p382 = pneg %p110
        %p383 = pneg %p107
        %p384 = pneg %p131
        %p385 = pneg %p128
        %p386 = pneg %p152
        %p387 = pneg %p149
        %p388 = pneg %p173
        %p389 = pneg %p170
        %p390 = pneg %p201
        %p391 = pneg %p198
        %s392 = sand.u32 %s188, 1
        %s393 = scalar_lea.sflag [#allocation4], %s392
        %s394 = sand.u32 %s188, 1
        %s395 = smul.addr %s394, 64
        %s396 = scalar_lea.vmem [#allocation7], %s395
        %p397 = pneg %p229
        %p398 = pneg %p226
        %s399 = sand.u32 %s31, 1
        %s400 = scalar_lea.sflag [#allocation9], %s399
        %s401 = sand.u32 %s216, 1
        %s402 = smul.addr %s401, 2
        %s403 = scalar_lea.vmem [#allocation8], %s402
        %p404 = pneg %p257
        %p405 = pneg %p254
        %s406 = sand.u32 %s31, 1
        %s407 = scalar_lea.sflag [#allocation9], %s406
        %s408 = sand.u32 %s244, 1
        %s409 = smul.addr %s408, 2
        %s410 = scalar_lea.vmem [#allocation10], %s409
        %s411 = smul.u32 %s36, 2
        %s412 = ssub.s32 %s411, 1
        %p413 = scmp.gt.s32.totalorder %s412, 0
        %s414 = scalar_select %p413, %s412, 0
        %p415 = scmp.lt.s32.totalorder %s414, 2
        %s416 = scalar_select %p415, %s414, 2
        %p417 = scmp.lt.s32.totalorder %s36, 1
        %s418 = scalar_select %p417, %s36, 1
        %s419 = smul.u32 2, %s418
        %s420 = ssub.s32 3, %s419
        %p421 = scmp.lt.s32.totalorder %s420, 2
        %s422 = scalar_select %p421, %s420, 2
        %s423 = smul.u32 256, %s422
        %s424 = smul.u32 2, %s36
        %s425 = smul.u32 2, %s36
        %s426 = smul.u32 2, %s36
        %v428 = vld [vmem:[%s356] sm:$0xff]
        %v429 = vld [vmem:[%s356 + $0x8] sm:$0xff]
        %v430 = vld [vmem:[%s365] sm:$0xff]
        %v431 = vld [vmem:[%s365 + $0x8] sm:$0xff]
        %v432 = vld [vmem:[%s365 + $0x10] sm:$0xff]
        %v433 = vld [vmem:[%s365 + $0x18] sm:$0xff]
        %v434 = vlaneseq
        %v435 = vand.u32 %v434, 127
        %v436 = vadd.s32 %v435, 128
        %v437 = vadd.s32 %v435, 256
        %s438 = smul.u32 %s36, 256
        %s439 = ssub.s32 %s438, 128
        %v440 = vstv %s439
        %v441 = vadd.s32 %v440, %v435
        %v442 = vadd.s32 %v440, %v436
        %v443 = vadd.s32 %v440, %v437
        %vm444 = vcmp.ge.s32.totalorder %v441, 0
        %vm445 = vcmp.ge.s32.totalorder %v442, 0
        %vm446 = vcmp.ge.s32.totalorder %v443, 0
        %vm447 = vcmp.lt.s32.totalorder %v441, 300
        %vm448 = vcmp.lt.s32.totalorder %v442, 300
        %vm449 = vcmp.lt.s32.totalorder %v443, 300
        %vm450 = vmand %vm444, %vm447
        %vm451 = vmand %vm445, %vm448
        %vm452 = vmand %vm446, %vm449
        %v453 = vsel %vm450, 1, 0
        %v454 = vsel %vm451, 1, 0
        %v455 = vsel %vm452, 1, 0
        %vm456 = vcmp.eq.s32.totalorder %v453, 1
        %vm457 = vcmp.eq.s32.totalorder %v454, 1
        %vm458 = vcmp.eq.s32.totalorder %v455, 1
        %v459 = vsel %vm456, %v428, 0.0
        %v460 = vsel %vm457, %v430, 0.0
        %v461 = vsel %vm458, %v431, 0.0
        %v462 = vsel %vm456, %v429, 0.0
        %v463 = vsel %vm457, %v432, 0.0
        %v464 = vsel %vm458, %v433, 0.0
        %v465 = vld [vmem:[%s2] sm:$0xff]
        %v466 = vld [vmem:[%s2 + $0x8] sm:$0xff]
        %468 = vset.pattern.permute.xlu0 0
        %469 = vperm.xlu0 %468, %v465
        %v470 = vpop.permute.xlu0 %469
        %473 = vset.pattern.permute.xlu0 0
        %474 = vperm.xlu0 %473, %v466
        %v475 = vpop.permute.xlu0 %474
        %v477 = vmul.f32 %v470, %v459
        %v478 = vmul.f32 %v470, %v460
        %v479 = vmul.f32 %v470, %v461
        %v480 = vmul.f32 %v475, %v462
        %v481 = vmul.f32 %v475, %v463
        %v482 = vmul.f32 %v475, %v464
        %483 = vset.pattern.permute.xlu0 1
        %484 = vperm.xlu0 %483, %v465
        %v485 = vpop.permute.xlu0 %484
        %487 = vset.pattern.permute.xlu0 1
        %488 = vperm.xlu0 %487, %v466
        %v489 = vpop.permute.xlu0 %488
        %v491 = vmul.f32 %v485, %v459
        %v492 = vmul.f32 %v485, %v460
        %v493 = vmul.f32 %v485, %v461
        %v494 = vmul.f32 %v489, %v462
        %v495 = vmul.f32 %v489, %v463
        %v496 = vmul.f32 %v489, %v464
        %503 = vrot.lane.b32.xlu0 %v491, 126
        %v504 = vpop.permute.xlu0 %503
        %505 = vrot.lane.b32.xlu0 %v492, 126
        %v506 = vpop.permute.xlu0 %505
        %507 = vrot.lane.b32.xlu0 %v493, 126
        %v508 = vpop.permute.xlu0 %507
        %509 = vrot.lane.b32.xlu0 %v494, 126
        %v510 = vpop.permute.xlu0 %509
        %511 = vrot.lane.b32.xlu0 %v495, 126
        %v512 = vpop.permute.xlu0 %511
        %513 = vrot.lane.b32.xlu0 %v496, 126
        %v514 = vpop.permute.xlu0 %513
        %vm515 = vcmask 1031168
        %v516 = vsel %vm515, %v504, %v506
        %v517 = vsel %vm515, %v506, %v508
        %v518 = vsel %vm515, %v510, %v512
        %v519 = vsel %vm515, %v512, %v514
        %v526 = vadd.f32 %v477, %v516
        %v527 = vadd.f32 %v478, %v517
        %v528 = vadd.f32 %v479, %v508
        %v529 = vadd.f32 %v480, %v518
        %v530 = vadd.f32 %v481, %v519
        %v531 = vadd.f32 %v482, %v514
        %532 = vset.pattern.permute.xlu0 2
        %533 = vperm.xlu0 %532, %v465
        %v534 = vpop.permute.xlu0 %533
        %536 = vset.pattern.permute.xlu0 2
        %537 = vperm.xlu0 %536, %v466
        %v538 = vpop.permute.xlu0 %537
        %v540 = vmul.f32 %v534, %v460
        %v541 = vmul.f32 %v534, %v461
        %v542 = vmul.f32 %v538, %v463
        %v543 = vmul.f32 %v538, %v464
        %548 = vrot.lane.b32.xlu0 %v540, 124
        %v549 = vpop.permute.xlu0 %548
        %550 = vrot.lane.b32.xlu0 %v541, 124
        %v551 = vpop.permute.xlu0 %550
        %552 = vrot.lane.b32.xlu0 %v542, 124
        %v553 = vpop.permute.xlu0 %552
        %554 = vrot.lane.b32.xlu0 %v543, 124
        %v555 = vpop.permute.xlu0 %554
        %vm556 = vcmask 1014784
        %v557 = vsel %vm556, %v549, %v551
        %v558 = vsel %vm556, %v553, %v555
        %v565 = vadd.f32 %v526, %v549
        %v566 = vadd.f32 %v527, %v557
        %v567 = vadd.f32 %v528, %v551
        %v568 = vadd.f32 %v529, %v553
        %v569 = vadd.f32 %v530, %v558
        %v570 = vadd.f32 %v531, %v555
        %v571 = vld [vmem:[%s3] sm:$0xff]
        %v572 = vld [vmem:[%s3 + $0x8] sm:$0xff]
        %vm573 = vcmp.ge.f32.partialorder %v565, 0.0
        %vm574 = vcmp.ge.f32.partialorder %v566, 0.0
        %vm575 = vcmp.ge.f32.partialorder %v567, 0.0
        %vm576 = vcmp.ge.f32.partialorder %v568, 0.0
        %vm577 = vcmp.ge.f32.partialorder %v569, 0.0
        %vm578 = vcmp.ge.f32.partialorder %v570, 0.0
        %580 = vset.pattern.permute.xlu0 0
        %581 = vperm.xlu0 %580, %v571
        %v582 = vpop.permute.xlu0 %581
        %585 = vset.pattern.permute.xlu0 0
        %586 = vperm.xlu0 %585, %v572
        %v587 = vpop.permute.xlu0 %586
        %v589 = vmul.f32 %v582, %v565
        %v590 = vmul.f32 %v582, %v566
        %v591 = vmul.f32 %v582, %v567
        %v592 = vmul.f32 %v587, %v568
        %v593 = vmul.f32 %v587, %v569
        %v594 = vmul.f32 %v587, %v570
        %v595 = vsel %vm573, %v565, %v589
        %v596 = vsel %vm574, %v566, %v590
        %v597 = vsel %vm575, %v567, %v591
        %v598 = vsel %vm576, %v568, %v592
        %v599 = vsel %vm577, %v569, %v593
        %v600 = vsel %vm578, %v570, %v594
        %v601 = vstv %s438
        %v602 = vadd.s32 %v601, %v435
        %v603 = vadd.s32 %v601, %v436
        %vm604 = vcmp.lt.s32.totalorder %v602, 304
        %vm605 = vcmp.lt.s32.totalorder %v603, 304
        %v606 = vsel %vm604, 1, 0
        %v607 = vsel %vm605, 1, 0
        %vm608 = vcmp.eq.s32.totalorder %v606, 1
        %vm609 = vcmp.eq.s32.totalorder %v607, 1
        %616 = vrot.lane.b32.xlu0 %v595, 4
        %v617 = vpop.permute.xlu0 %616
        %618 = vrot.lane.b32.xlu0 %v596, 4
        %v619 = vpop.permute.xlu0 %618
        %620 = vrot.lane.b32.xlu0 %v597, 4
        %v621 = vpop.permute.xlu0 %620
        %622 = vrot.lane.b32.xlu0 %v598, 4
        %v623 = vpop.permute.xlu0 %622
        %624 = vrot.lane.b32.xlu0 %v599, 4
        %v625 = vpop.permute.xlu0 %624
        %626 = vrot.lane.b32.xlu0 %v600, 4
        %v627 = vpop.permute.xlu0 %626
        %vm628 = vcmask 31744
        %v629 = vsel %vm628, %v617, %v619
        %v630 = vsel %vm628, %v619, %v621
        %v631 = vsel %vm628, %v623, %v625
        %v632 = vsel %vm628, %v625, %v627
        %v637 = vsel %vm608, %v629, 0.0
        %v638 = vsel %vm609, %v630, 0.0
        %v639 = vsel %vm608, %v631, 0.0
        %v640 = vsel %vm609, %v632, 0.0
        %v641 = vadd.f32 %v637, %v639
        %v642 = vrot.slane %v641, 4
        %v643 = vadd.f32 %v641, %v642
        %v644 = vrot.slane %v643, 2
        %v645 = vadd.f32 %v643, %v644
        %v646 = vrot.slane %v645, 1
        %v647 = vadd.f32 %v645, %v646
        %v648 = vadd.f32 %v638, %v640
        %v649 = vrot.slane %v648, 4
        %v650 = vadd.f32 %v648, %v649
        %v651 = vrot.slane %v650, 2
        %v652 = vadd.f32 %v650, %v651
        %v653 = vrot.slane %v652, 1
        %v654 = vadd.f32 %v652, %v653
        %v657 = vcombine.low %v647, %v654
        %v659 = vunpack.c.l.s4 1966171168
        %v660 = vunpack.c.0.s8 %v659
        %v661 = vlaneseq
        %v662 = vshrl.u32 %v661, 7
        %v663 = vsub.s32 %v660, %v662
        %v664 = vrot.slane %v657, %v663
        %v666 = vunpack.c.l.s4 1966171168
        %v667 = vunpack.c.0.s8 %v666
        %v668 = vlaneseq
        %v669 = vshrl.u32 %v668, 7
        %v670 = vsub.s32 %v667, %v669
        %v671 = vrot.slane %v664, %v670
        %v673 = vlaneseq
        %vm674 = vcmp.ge.s32.totalorder %v673, 0
        %vm675 = vcmp.lt.s32.totalorder %v673, 256
        %vm676 = vmand %vm674, %vm675
        %677 = vst.msk [vmem:[%s403] sm:$0x3] %vm676, %v671
        %v678 = vmul.f32 %v637, %v637
        %v679 = vmul.f32 %v638, %v638
        %v680 = vmul.f32 %v639, %v639
        %v681 = vmul.f32 %v640, %v640
        %v682 = vadd.f32 %v678, %v680
        %v683 = vrot.slane %v682, 4
        %v684 = vadd.f32 %v682, %v683
        %v685 = vrot.slane %v684, 2
        %v686 = vadd.f32 %v684, %v685
        %v687 = vrot.slane %v686, 1
        %v688 = vadd.f32 %v686, %v687
        %v689 = vadd.f32 %v679, %v681
        %v690 = vrot.slane %v689, 4
        %v691 = vadd.f32 %v689, %v690
        %v692 = vrot.slane %v691, 2
        %v693 = vadd.f32 %v691, %v692
        %v694 = vrot.slane %v693, 1
        %v695 = vadd.f32 %v693, %v694
        %v698 = vcombine.low %v688, %v695
        %v700 = vunpack.c.l.s4 1966171168
        %v701 = vunpack.c.0.s8 %v700
        %v702 = vlaneseq
        %v703 = vshrl.u32 %v702, 7
        %v704 = vsub.s32 %v701, %v703
        %v705 = vrot.slane %v698, %v704
        %v707 = vunpack.c.l.s4 1966171168
        %v708 = vunpack.c.0.s8 %v707
        %v709 = vlaneseq
        %v710 = vshrl.u32 %v709, 7
        %v711 = vsub.s32 %v708, %v710
        %v712 = vrot.slane %v705, %v711
        %714 = vst.msk [vmem:[%s410] sm:$0x3] %vm676, %v712
        %v715 = vld [vmem:[%s4] sm:$0xf]
        %v716 = vld [vmem:[%s4 + $0x4] sm:$0xf]
        %v717 = vld [vmem:[%s4 + $0x8] sm:$0xf]
        %v718 = vld [vmem:[%s4 + $0xc] sm:$0xf]
        %v719 = vpack.c.bf16 %v639, %v637
        %v720 = vpack.c.bf16 %v640, %v638
        %v725 = vunpack.c.l.b16 %v715
        %v726 = vunpack.c.l.b16 %v716
        %v727 = vunpack.c.l.b16 %v717
        %v728 = vunpack.c.l.b16 %v718
        %v729 = vpack.c.b16 %v726, %v725
        %v730 = vpack.c.b16 %v728, %v727
        %vm731 = vcmask 130048
        %v733 = vsel %vm731, %v729, 0
        %v736 = vsel %vm731, %v730, 0
        %738 = vmatprep.subr.bf16.mxu0 %v720
        %739 = vmatpush1.bf16.msra.mxu0 %v719
        %740 = vmatprep.subr.bf16.mxu0 0
        %741 = vmatpush1.bf16.msra.mxu0 0
        %742 = vmatprep.subr.bf16.mxu0 0
        %743 = vmatpush1.bf16.msra.mxu0 0
        %744 = vmatprep.subr.bf16.mxu0 0
        %745 = vmatpush1.bf16.msra.mxu0 0
        %746 = vmatprep.subr.bf16.mxu0 0
        %747 = vmatpush1.bf16.msra.mxu0 0
        %748 = vmatprep.subr.bf16.mxu0 0
        %749 = vmatpush1.bf16.msra.mxu0 0
        %750 = vmatprep.subr.bf16.mxu0 0
        %751 = vmatpush1.bf16.msra.mxu0 0
        %752 = vmatprep.subr.bf16.mxu0 0
        %753 = vmatpush1.bf16.msra.mxu0 0
        %754 = vmatprep.subr.bf16.mxu0 0
        %755 = vmatpush1.bf16.msra.mxu0 0
        %756 = vmatprep.subr.bf16.mxu0 0
        %757 = vmatpush1.bf16.msra.mxu0 0
        %758 = vmatprep.subr.bf16.mxu0 0
        %759 = vmatpush1.bf16.msra.mxu0 0
        %760 = vmatprep.subr.bf16.mxu0 0
        %761 = vmatpush1.bf16.msra.mxu0 0
        %762 = vmatprep.subr.bf16.mxu0 0
        %763 = vmatpush1.bf16.msra.mxu0 0
        %764 = vmatprep.subr.bf16.mxu0 0
        %765 = vmatpush1.bf16.msra.mxu0 0
        %766 = vmatprep.subr.bf16.mxu0 0
        %767 = vmatpush1.bf16.msra.mxu0 0
        %768 = vmatprep.subr.bf16.mxu0 0
        %769 = vmatpush1.bf16.msra.mxu0 0
        %770 = vmatprep.mubr.bf16.mxu0 0
        %771 = vmatmul.mubr.bf16.gmra.mrb[0].mxu0 %v733
        %v772 = vpop.f32.mrb[0].mxu0
        %v773 = vadd.f32 0.0, %v772
        %v774 = vpop.f32.mrb[0].mxu0
        %v775 = vadd.f32 0.0, %v774
        %v776 = vpop.f32.mrb[0].mxu0
        %v777 = vadd.f32 0.0, %v776
        %v778 = vpop.f32.mrb[0].mxu0
        %v779 = vadd.f32 0.0, %v778
        %780 = vmatprep.mubr.bf16.mxu0 0
        %781 = vmatmul.mubr.bf16.gmra.mrb[0].mxu0 %v736
        %v782 = vpop.f32.mrb[0].mxu0
        %v783 = vadd.f32 0.0, %v782
        %v784 = vpop.f32.mrb[0].mxu0
        %v785 = vadd.f32 0.0, %v784
        %v786 = vpop.f32.mrb[0].mxu0
        %v787 = vadd.f32 0.0, %v786
        %v788 = vpop.f32.mrb[0].mxu0
        %v789 = vadd.f32 0.0, %v788
        %790 = vdwg.mxu0
        %791 = vst [vmem:[%s396] sm:$0xff] %v773
        %792 = vst [vmem:[%s396 + $0x8] sm:$0xff] %v775
        %793 = vst [vmem:[%s396 + $0x10] sm:$0xff] %v777
        %794 = vst [vmem:[%s396 + $0x18] sm:$0xff] %v779
        %795 = vst [vmem:[%s396 + $0x20] sm:$0xff] %v783
        %796 = vst [vmem:[%s396 + $0x28] sm:$0xff] %v785
        %797 = vst [vmem:[%s396 + $0x30] sm:$0xff] %v787
        %798 = vst [vmem:[%s396 + $0x38] sm:$0xff] %v789
        %s799 = sand.u32 %s188, 1
        %s800 = scalar_lea.sflag [#allocation4], %s799
        %s801 = sand.u32 %s188, 1
        %s802 = smul.addr %s801, 64
        %s803 = scalar_lea.vmem [#allocation7], %s802
        %s804 = sand.u32 %s31, 1
        %s805 = scalar_lea.sflag [#allocation9], %s804
        %s806 = sand.u32 %s216, 1
        %s807 = smul.addr %s806, 2
        %s808 = scalar_lea.vmem [#allocation8], %s807
        %s809 = sand.u32 %s31, 1
        %s810 = scalar_lea.sflag [#allocation9], %s809
        %s811 = sand.u32 %s244, 1
        %s812 = smul.addr %s811, 2
        %s813 = scalar_lea.vmem [#allocation10], %s812
        // Predicated region
        $region49: #{tpu_custom_call.1} parent=39 // pred_check
          %p814 = pneg %p198
        $region50: #{tpu_custom_call.1} parent=39 // pred_check_branch
          %816 = sbr.rel (%p814) target = $region52
        $region51: #{tpu_custom_call.1} parent=39 // pred_region
          %s817 = smul.u32 2, %s36
          %s819 = ssub.s32 1024, 1024
          %820 = vsyncadd %s800, %s819
          %s821 = smul.addr %s35, 16
          %s822 = sadd.s32 %s817, %s821
          %s823 = smul.addr %s822, 128
          %s824 = scalar_lea.hbm %s5, %s823
          %s825 = sshll.u32 %s803, 4
          %s826 = int_to_ptr.vmem [resolvable:$true] %s825
          %831 = dma.vmem_to_hbm [thread:$0]  %s826, 1024, %s824, %s800, 256, 512, 16
        $region52: #{tpu_custom_call.1} parent=39 // pred_fallthru
          _
        // Predicated region
        $region53: #{tpu_custom_call.1} parent=39 // pred_check
          %p832 = pneg %p226
        $region54: #{tpu_custom_call.1} parent=39 // pred_check_branch
          %834 = sbr.rel (%p832) target = $region56
        $region55: #{tpu_custom_call.1} parent=39 // pred_region
          %s835 = smul.u32 2, %s36
          %s837 = ssub.s32 32, 32
          %838 = vsyncadd %s805, %s837
          %s839 = smul.addr %s35, 4
          %s840 = sadd.s32 %s835, %s839
          %s841 = smul.addr %s840, 16
          %s842 = scalar_lea.hbm %s6, %s841
          %s844 = sshll.u32 %s808, 4
          %s845 = int_to_ptr.vmem [resolvable:$true] %s844
          %847 = dma.vmem_to_hbm [thread:$0]  %s845, 32, %s842, %s805
        $region56: #{tpu_custom_call.1} parent=39 // pred_fallthru
          _
        // Predicated region
        $region57: #{tpu_custom_call.1} parent=39 // pred_check
          %p848 = pneg %p254
        $region58: #{tpu_custom_call.1} parent=39 // pred_check_branch
          %850 = sbr.rel (%p848) target = $region60
        $region59: #{tpu_custom_call.1} parent=39 // pred_region
          %s851 = smul.u32 2, %s36
          %s853 = ssub.s32 32, 32
          %854 = vsyncadd %s810, %s853
          %s855 = smul.addr %s35, 4
          %s856 = sadd.s32 %s851, %s855
          %s857 = smul.addr %s856, 16
          %s858 = scalar_lea.hbm %s7, %s857
          %s860 = sshll.u32 %s813, 4
          %s861 = int_to_ptr.vmem [resolvable:$true] %s860
          %863 = dma.vmem_to_hbm [thread:$0]  %s861, 32, %s858, %s810
        $region60: #{tpu_custom_call.1} parent=39 // pred_fallthru
          _
      $region40: #{tpu_custom_call.1} parent=5 // pred_fallthru
        _
      %p864 = scmp.le.s32.totalorder 2, %s26
      // Predicated region
      $region61: #{tpu_custom_call.1} parent=5 // pred_check
        %p865 = pneg %p864
      $region62: #{tpu_custom_call.1} parent=5 // pred_check_branch
        %867 = sbr.rel (%p865) target = $region64
      $region63: #{tpu_custom_call.1} parent=5 // pred_region
        %s868 = ssub.s32 %s26, 2
        // Predicated region
        $region65: #{tpu_custom_call.1} parent=63 // pred_check
          %p869 = pneg %p204
        $region66: #{tpu_custom_call.1} parent=63 // pred_check_branch
          %871 = sbr.rel (%p869) target = $region68
        $region67: #{tpu_custom_call.1} parent=63 // pred_region
          %s872 = sand.u32 %s189, 1
          %s873 = scalar_lea.sflag [#allocation4], %s872
          %s874 = sand.u32 %s189, 1
          %s875 = smul.addr %s874, 64
          %s876 = scalar_lea.vmem [#allocation7], %s875
          %877 = dma.done %s873, 1024
        $region68: #{tpu_custom_call.1} parent=63 // pred_fallthru
          _
        // Predicated region
        $region69: #{tpu_custom_call.1} parent=63 // pred_check
          %p878 = pneg %p232
        $region70: #{tpu_custom_call.1} parent=63 // pred_check_branch
          %880 = sbr.rel (%p878) target = $region72
        $region71: #{tpu_custom_call.1} parent=63 // pred_region
          %s881 = sand.u32 %s32, 1
          %s882 = scalar_lea.sflag [#allocation9], %s881
          %s883 = sand.u32 %s217, 1
          %s884 = smul.addr %s883, 2
          %s885 = scalar_lea.vmem [#allocation8], %s884
          %886 = dma.done %s882, 32
        $region72: #{tpu_custom_call.1} parent=63 // pred_fallthru
          _
        // Predicated region
        $region73: #{tpu_custom_call.1} parent=63 // pred_check
          %p887 = pneg %p260
        $region74: #{tpu_custom_call.1} parent=63 // pred_check_branch
          %889 = sbr.rel (%p887) target = $region76
        $region75: #{tpu_custom_call.1} parent=63 // pred_region
          %s890 = sand.u32 %s32, 1
          %s891 = scalar_lea.sflag [#allocation9], %s890
          %s892 = sand.u32 %s245, 1
          %s893 = smul.addr %s892, 2
          %s894 = scalar_lea.vmem [#allocation10], %s893
          %895 = dma.done %s891, 32
        $region76: #{tpu_custom_call.1} parent=63 // pred_fallthru
          _
      $region64: #{tpu_custom_call.1} parent=5 // pred_fallthru
        _
    $region6: #{tpu_custom_call.1} parent=1 // loop_footer
      %s30 = sadd.s32 1, %s26
    $region7: #{tpu_custom_call.1} parent=1 // loop_footer_branch
      %25 = sbr.rel target = $region3
    $region8: #{tpu_custom_call.1} parent=1 // loop_exit
      _
    %896 = vsyncpa [#allocation3], 1
    %s897 = scalar_lea.sflag [#allocation3], 1
    %898 = vsyncpa %s897, 1
    %899 = vsyncpa [#allocation6], 1
    %s900 = scalar_lea.sflag [#allocation6], 1
    %901 = vsyncpa %s900, 1
    %902 = vsyncpa [#allocation4], 1
    %s903 = scalar_lea.sflag [#allocation4], 1
    %904 = vsyncpa %s903, 1
    %905 = vsyncpa [#allocation9], 1
    %s906 = scalar_lea.sflag [#allocation9], 1
    %907 = vsyncpa %s906, 1

</llo_original>
